<compile_context>
chip_gen: v5e
topology: v5e:2x2
jax: 0.10.0
libtpu: 0.0.40
codegen_flags: <defaults>
</compile_context>

<pallas_src>
import functools

import jax
import jax.numpy as jnp
from jax.experimental import pallas as pl
from jax.experimental.pallas import tpu as pltpu

INPUT_SIZE = 4      # Environment.INPUT_SIZE (not defined in the snippet)
HIDDEN1 = 12
HIDDEN2 = 8
OUTPUT_SIZE = 2     # Environment.OUTPUT_SIZE (not defined in the snippet)
LANE = 128          # lane-dense padded feature width
DEFAULT_TB = 512    # batch tile (rows); multiple of 8; sized well under VMEM


def _round_up(n, m):
    return ((n + m - 1) // m) * m


def qnn_kernel(x_ref, w1_ref, b1_ref, w2_ref, b2_ref, w3_ref, b3_ref, o_ref):
    tb = x_ref.shape[0]
    x = x_ref[...]                    # [TB, 4]
    w1 = w1_ref[...]                  # [4, 128]   (H1 padded to 128 lanes)

    # ---- Layer 1: K=4 contraction on the VPU (static broadcast-FMA unroll).
    # Bias is the accumulator init -> single hoisted broadcast, no extra add.
    h = jnp.broadcast_to(b1_ref[...], (tb, LANE))
    for k in range(INPUT_SIZE):       # static unroll over K=4
        h = h + x[:, k:k + 1] * w1[k:k + 1, :]
    h1 = jnp.maximum(h, 0.0)          # [TB, 128]; lanes >= 12 are exactly 0

    # ---- Layers 2/3: lane-dense 128-wide (zero-padded) contractions on the MXU.
    h2 = jnp.dot(h1, w2_ref[...], preferred_element_type=jnp.float32) + b2_ref[...]
    h2 = jnp.maximum(h2, 0.0)         # [TB, 128]; lanes >= 8 are 0
    h3 = jnp.dot(h2, w3_ref[...], preferred_element_type=jnp.float32) + b3_ref[...]
    h3 = jnp.maximum(h3, 0.0)         # [TB, 128]; lanes >= 2 are 0

    o_ref[...] = h3.astype(o_ref.dtype)   # unmasked, lane-dense store


@functools.partial(jax.jit, static_argnames=("tb",))
def qnn_forward(x, padded_params, *, tb=DEFAULT_TB):
    """x: [B, INPUT_SIZE] float32. padded_params: dict of 128-lane-padded weights."""
    B = x.shape[0]
    # Batch tile: multiple of 8 sublanes, never larger than the (rounded) batch.
    tb = max(8, _round_up(min(tb, _round_up(B, 8)), 8))
    Bp = _round_up(B, tb)
    if Bp != B:
        x = jnp.pad(x, ((0, Bp - B), (0, 0)))

    p = padded_params
    out = pl.pallas_call(
        qnn_kernel,
        out_shape=jax.ShapeDtypeStruct((Bp, LANE), jnp.float32),
        grid_spec=pltpu.PrefetchScalarGridSpec(
            num_scalar_prefetch=0,
            grid=(pl.cdiv(Bp, tb),),
            in_specs=[
                # batch tile: pipelined / double-buffered across the grid
                pl.BlockSpec((tb, INPUT_SIZE), lambda i: (i, 0)),
                # weights & biases: constant index_map -> DMA'd once, stay resident
                pl.BlockSpec((INPUT_SIZE, LANE), lambda i: (0, 0)),
                pl.BlockSpec((1, LANE), lambda i: (0, 0)),
                pl.BlockSpec((LANE, LANE), lambda i: (0, 0)),
                pl.BlockSpec((1, LANE), lambda i: (0, 0)),
                pl.BlockSpec((LANE, LANE), lambda i: (0, 0)),
                pl.BlockSpec((1, LANE), lambda i: (0, 0)),
            ],
            out_specs=pl.BlockSpec((tb, LANE), lambda i: (i, 0)),
        ),
        compiler_params=pltpu.CompilerParams(
            dimension_semantics=("parallel",)),   # both TCs on v7x
    )(x, p["w1"], p["b1"], p["w2"], p["b2"], p["w3"], p["b3"])
    return out[:B, :OUTPUT_SIZE]


def init_params(key):
    """Deterministic init mimicking nn.Linear's U(-1/sqrt(fan_in), 1/sqrt(fan_in)).

    Weights stored [in, out] (transpose of PyTorch's [out, in]); bias [1, out].
    """
    def linear_init(k, fan_in, fan_out):
        kw, kb = jax.random.split(k)
        bound = 1.0 / jnp.sqrt(jnp.float32(fan_in))
        w = jax.random.uniform(kw, (fan_in, fan_out), jnp.float32, -bound, bound)
        b = jax.random.uniform(kb, (1, fan_out), jnp.float32, -bound, bound)
        return w, b

    k1, k2, k3 = jax.random.split(key, 3)
    w1, b1 = linear_init(k1, INPUT_SIZE, HIDDEN1)
    w2, b2 = linear_init(k2, HIDDEN1, HIDDEN2)
    w3, b3 = linear_init(k3, HIDDEN2, OUTPUT_SIZE)
    return {"w1": w1, "b1": b1, "w2": w2, "b2": b2, "w3": w3, "b3": b3}


def pad_params(p):
    """Zero-pad feature dims to 128 once; padded copies are what the kernel uses."""
    def pad2(a, rows, cols):
        return jnp.pad(a, ((0, rows - a.shape[0]), (0, cols - a.shape[1])))
    return {
        "w1": pad2(p["w1"], INPUT_SIZE, LANE),   # [4, 128]
        "b1": pad2(p["b1"], 1, LANE),            # [1, 128]
        "w2": pad2(p["w2"], LANE, LANE),         # [128, 128]
        "b2": pad2(p["b2"], 1, LANE),
        "w3": pad2(p["w3"], LANE, LANE),         # [128, 128]
        "b3": pad2(p["b3"], 1, LANE),
    }


def qnn_reference(x, p):
    h1 = jnp.maximum(x @ p["w1"] + p["b1"], 0.0)
    h2 = jnp.maximum(h1 @ p["w2"] + p["b2"], 0.0)
    h3 = jnp.maximum(h2 @ p["w3"] + p["b3"], 0.0)
    return h3


if __name__ == "__main__":
    key = jax.random.PRNGKey(0)
    kx, kp = jax.random.split(key)

    params = init_params(kp)
    pparams = pad_params(params)

    # Multi-tile grid: B=512 rows with 128-row tiles -> grid of 4.
    B = 512
    x = jax.random.normal(kx, (B, INPUT_SIZE), jnp.float32)
    out = jax.block_until_ready(qnn_forward(x, pparams, tb=128))
    ref = qnn_reference(x, params)
    assert out.shape == (B, OUTPUT_SIZE)
    assert jnp.allclose(out, ref, atol=1e-5, rtol=1e-5), "mismatch vs reference (B=512)"

    # Tiny / ragged batch: exercises the batch-padding path (B=7 -> 8, grid of 1).
    xs = jax.random.normal(jax.random.fold_in(kx, 1), (7, INPUT_SIZE), jnp.float32)
    outs = jax.block_until_ready(qnn_forward(xs, pparams))
    refs = qnn_reference(xs, params)
    assert outs.shape == (7, OUTPUT_SIZE)
    assert jnp.allclose(outs, refs, atol=1e-5, rtol=1e-5), "mismatch vs reference (B=7)"

    print("KERNEL_OK")
</pallas_src>

<mosaic_0001>
module attributes {stable_mosaic.version = 11 : i64} {
  func.func @qnn_kernel(%arg0: i32, %arg1: memref<128x4xf32, #tpu.memory_space<vmem>>, %arg2: memref<4x128xf32, #tpu.memory_space<vmem>>, %arg3: memref<1x128xf32, #tpu.memory_space<vmem>>, %arg4: memref<128x128xf32, #tpu.memory_space<vmem>>, %arg5: memref<1x128xf32, #tpu.memory_space<vmem>>, %arg6: memref<128x128xf32, #tpu.memory_space<vmem>>, %arg7: memref<1x128xf32, #tpu.memory_space<vmem>>, %arg8: memref<128x128xf32, #tpu.memory_space<vmem>>) attributes {dimension_semantics = [#tpu.dimension_semantics<parallel>], iteration_bounds = array<i64: 4>, scalar_prefetch = 0 : i64, scratch_operands = 0 : i64, tpu.core_type = #tpu.core_type<tc>, window_params = [{transform_indices = @transform_0, window_bounds = array<i64: 128, 4>}, {pipeline_mode = #tpu.pipeline_mode<synchronous>, transform_indices = @transform_1, window_bounds = array<i64: 4, 128>}, {pipeline_mode = #tpu.pipeline_mode<synchronous>, transform_indices = @transform_2, window_bounds = array<i64: 1, 128>}, {pipeline_mode = #tpu.pipeline_mode<synchronous>, transform_indices = @transform_3, window_bounds = array<i64: 128, 128>}, {pipeline_mode = #tpu.pipeline_mode<synchronous>, transform_indices = @transform_4, window_bounds = array<i64: 1, 128>}, {pipeline_mode = #tpu.pipeline_mode<synchronous>, transform_indices = @transform_5, window_bounds = array<i64: 128, 128>}, {pipeline_mode = #tpu.pipeline_mode<synchronous>, transform_indices = @transform_6, window_bounds = array<i64: 1, 128>}, {transform_indices = @transform_7, window_bounds = array<i64: 128, 128>}]} {
    %c0 = arith.constant 0 : index
    %c0_0 = arith.constant 0 : index
    %0 = vector.load %arg1[%c0, %c0_0] : memref<128x4xf32, #tpu.memory_space<vmem>>, vector<128x4xf32>
    %c0_1 = arith.constant 0 : index
    %c0_2 = arith.constant 0 : index
    %1 = vector.load %arg2[%c0_1, %c0_2] : memref<4x128xf32, #tpu.memory_space<vmem>>, vector<4x128xf32>
    %c0_3 = arith.constant 0 : index
    %c0_4 = arith.constant 0 : index
    %2 = vector.load %arg3[%c0_3, %c0_4] : memref<1x128xf32, #tpu.memory_space<vmem>>, vector<1x128xf32>
    %3 = vector.shape_cast %2 : vector<1x128xf32> to vector<1x128xf32>
    %4 = vector.broadcast %3 : vector<1x128xf32> to vector<128x128xf32>
    %5 = vector.extract_strided_slice %0 {offsets = [0, 0], sizes = [128, 1], strides = [1, 1]} : vector<128x4xf32> to vector<128x1xf32>
    %6 = vector.extract_strided_slice %1 {offsets = [0, 0], sizes = [1, 128], strides = [1, 1]} : vector<4x128xf32> to vector<1x128xf32>
    %7 = vector.broadcast %5 : vector<128x1xf32> to vector<128x128xf32>
    %8 = vector.broadcast %6 : vector<1x128xf32> to vector<128x128xf32>
    %9 = arith.mulf %7, %8 : vector<128x128xf32>
    %10 = arith.addf %4, %9 : vector<128x128xf32>
    %11 = vector.extract_strided_slice %0 {offsets = [0, 1], sizes = [128, 1], strides = [1, 1]} : vector<128x4xf32> to vector<128x1xf32>
    %12 = vector.extract_strided_slice %1 {offsets = [1, 0], sizes = [1, 128], strides = [1, 1]} : vector<4x128xf32> to vector<1x128xf32>
    %13 = vector.broadcast %11 : vector<128x1xf32> to vector<128x128xf32>
    %14 = vector.broadcast %12 : vector<1x128xf32> to vector<128x128xf32>
    %15 = arith.mulf %13, %14 : vector<128x128xf32>
    %16 = arith.addf %10, %15 : vector<128x128xf32>
    %17 = vector.extract_strided_slice %0 {offsets = [0, 2], sizes = [128, 1], strides = [1, 1]} : vector<128x4xf32> to vector<128x1xf32>
    %18 = vector.extract_strided_slice %1 {offsets = [2, 0], sizes = [1, 128], strides = [1, 1]} : vector<4x128xf32> to vector<1x128xf32>
    %19 = vector.broadcast %17 : vector<128x1xf32> to vector<128x128xf32>
    %20 = vector.broadcast %18 : vector<1x128xf32> to vector<128x128xf32>
    %21 = arith.mulf %19, %20 : vector<128x128xf32>
    %22 = arith.addf %16, %21 : vector<128x128xf32>
    %23 = vector.extract_strided_slice %0 {offsets = [0, 3], sizes = [128, 1], strides = [1, 1]} : vector<128x4xf32> to vector<128x1xf32>
    %24 = vector.extract_strided_slice %1 {offsets = [3, 0], sizes = [1, 128], strides = [1, 1]} : vector<4x128xf32> to vector<1x128xf32>
    %25 = vector.broadcast %23 : vector<128x1xf32> to vector<128x128xf32>
    %26 = vector.broadcast %24 : vector<1x128xf32> to vector<128x128xf32>
    %27 = arith.mulf %25, %26 : vector<128x128xf32>
    %28 = arith.addf %22, %27 : vector<128x128xf32>
    %cst = arith.constant 0.000000e+00 : f32
    %29 = vector.broadcast %cst : f32 to vector<128x128xf32>
    %30 = arith.maximumf %28, %29 : vector<128x128xf32>
    %c0_5 = arith.constant 0 : index
    %c0_6 = arith.constant 0 : index
    %31 = vector.load %arg4[%c0_5, %c0_6] : memref<128x128xf32, #tpu.memory_space<vmem>>, vector<128x128xf32>
    %cst_7 = arith.constant dense<0.000000e+00> : vector<128x128xf32>
    %32 = tpu.matmul %30, %31, %cst_7 {dimension_numbers = #tpu.dot_dimension_numbers<[1], [0], [0], [1], [0, 0, 1, 1], [], []>} : vector<128x128xf32>, vector<128x128xf32>, vector<128x128xf32> -> vector<128x128xf32>
    %c0_8 = arith.constant 0 : index
    %c0_9 = arith.constant 0 : index
    %33 = vector.load %arg5[%c0_8, %c0_9] : memref<1x128xf32, #tpu.memory_space<vmem>>, vector<1x128xf32>
    %34 = vector.broadcast %33 : vector<1x128xf32> to vector<128x128xf32>
    %35 = arith.addf %32, %34 : vector<128x128xf32>
    %cst_10 = arith.constant 0.000000e+00 : f32
    %36 = vector.broadcast %cst_10 : f32 to vector<128x128xf32>
    %37 = arith.maximumf %35, %36 : vector<128x128xf32>
    %c0_11 = arith.constant 0 : index
    %c0_12 = arith.constant 0 : index
    %38 = vector.load %arg6[%c0_11, %c0_12] : memref<128x128xf32, #tpu.memory_space<vmem>>, vector<128x128xf32>
    %cst_13 = arith.constant dense<0.000000e+00> : vector<128x128xf32>
    %39 = tpu.matmul %37, %38, %cst_13 {dimension_numbers = #tpu.dot_dimension_numbers<[1], [0], [0], [1], [0, 0, 1, 1], [], []>} : vector<128x128xf32>, vector<128x128xf32>, vector<128x128xf32> -> vector<128x128xf32>
    %c0_14 = arith.constant 0 : index
    %c0_15 = arith.constant 0 : index
    %40 = vector.load %arg7[%c0_14, %c0_15] : memref<1x128xf32, #tpu.memory_space<vmem>>, vector<1x128xf32>
    %41 = vector.broadcast %40 : vector<1x128xf32> to vector<128x128xf32>
    %42 = arith.addf %39, %41 : vector<128x128xf32>
    %cst_16 = arith.constant 0.000000e+00 : f32
    %43 = vector.broadcast %cst_16 : f32 to vector<128x128xf32>
    %44 = arith.maximumf %42, %43 : vector<128x128xf32>
    %c0_17 = arith.constant 0 : index
    %c0_18 = arith.constant 0 : index
    %45 = vector.load %arg8[%c0_17, %c0_18] : memref<128x128xf32, #tpu.memory_space<vmem>>, vector<128x128xf32>
    tpu.vector_store %arg8[%c0_17, %c0_18], %44 {strides = array<i32>} : memref<128x128xf32, #tpu.memory_space<vmem>>, vector<128x128xf32>,
    return
  }
  func.func @transform_0(%arg0: i32) -> (i32, i32) {
    %c0_i32 = arith.constant 0 : i32
    %c0_i32_0 = arith.constant 0 : i32
    return %arg0, %c0_i32 : i32, i32
  }
  func.func @transform_1(%arg0: i32) -> (i32, i32) {
    %c0_i32 = arith.constant 0 : i32
    %c0_i32_0 = arith.constant 0 : i32
    %c0_i32_1 = arith.constant 0 : i32
    return %c0_i32, %c0_i32_0 : i32, i32
  }
  func.func @transform_2(%arg0: i32) -> (i32, i32) {
    %c0_i32 = arith.constant 0 : i32
    %c0_i32_0 = arith.constant 0 : i32
    %c0_i32_1 = arith.constant 0 : i32
    return %c0_i32, %c0_i32_0 : i32, i32
  }
  func.func @transform_3(%arg0: i32) -> (i32, i32) {
    %c0_i32 = arith.constant 0 : i32
    %c0_i32_0 = arith.constant 0 : i32
    %c0_i32_1 = arith.constant 0 : i32
    return %c0_i32, %c0_i32_0 : i32, i32
  }
  func.func @transform_4(%arg0: i32) -> (i32, i32) {
    %c0_i32 = arith.constant 0 : i32
    %c0_i32_0 = arith.constant 0 : i32
    %c0_i32_1 = arith.constant 0 : i32
    return %c0_i32, %c0_i32_0 : i32, i32
  }
  func.func @transform_5(%arg0: i32) -> (i32, i32) {
    %c0_i32 = arith.constant 0 : i32
    %c0_i32_0 = arith.constant 0 : i32
    %c0_i32_1 = arith.constant 0 : i32
    return %c0_i32, %c0_i32_0 : i32, i32
  }
  func.func @transform_6(%arg0: i32) -> (i32, i32) {
    %c0_i32 = arith.constant 0 : i32
    %c0_i32_0 = arith.constant 0 : i32
    %c0_i32_1 = arith.constant 0 : i32
    return %c0_i32, %c0_i32_0 : i32, i32
  }
  func.func @transform_7(%arg0: i32) -> (i32, i32) {
    %c0_i32 = arith.constant 0 : i32
    %c0_i32_0 = arith.constant 0 : i32
    return %arg0, %c0_i32 : i32, i32
  }
}

</mosaic_0001>

<llo_original>
// kernel: qnn_forward.1
$region0: #{qnn_forward.1}
  #allocation0 [shape = 'u32[]', space=smem, size = 0x4, offset = 0x4, fixed_abs, tag = 'smem constant byte address 0x4 - core index']
  #allocation1 [shape = 'u32[72,128]{1,0:T(1,128)}', space=vmem, size = 0x9000, scoped, tag = 'internal scratch']
  %s0 = inlined_call_operand.vmem [shape: f32[512,4], index: 0, kind: input, shape index: {}]
  %s1 = inlined_call_operand.vmem [shape: f32[4,128], index: 1, kind: input, shape index: {}]
  %s2 = inlined_call_operand.vmem [shape: f32[1,128], index: 2, kind: input, shape index: {}]
  %s3 = inlined_call_operand.vmem [shape: f32[128,128], index: 3, kind: input, shape index: {}]
  %s4 = inlined_call_operand.vmem [shape: f32[1,128], index: 4, kind: input, shape index: {}]
  %s5 = inlined_call_operand.vmem [shape: f32[128,128], index: 5, kind: input, shape index: {}]
  %s6 = inlined_call_operand.vmem [shape: f32[1,128], index: 6, kind: input, shape index: {}]
  %s7 = inlined_call_operand.vmem [shape: f32[512,128], index: 7, kind: output, shape index: {}]
  %s8 = sld [smem:[#allocation0]]
  $region61: #{qnn_forward.1} parent=0
    _
  %s10 = ssub.s32 1, %s8
  %s11 = scalar_select 0, %s10, %s8
  loop: start=0, step=1, limit=6
  $region2: #{qnn_forward.1} parent=0 // loop_pre_header
    _
  $region3: #{qnn_forward.1} parent=0 // loop_header
    %s13 = sphi 0, %s17
    %p14 = scmp.ge.s32.totalorder %s13, 6
    %s23 = sphi 0, %s25
    %s26 = sphi 0, %s23
    %s27 = sphi 0, %s26
    %s43 = sphi 0, %s27
    %s47 = sphi 0, %s47
    %s49 = sphi 0, %s47
    %s50 = sphi 0, %s49
    %s64 = sphi 0, %s50
    %s68 = sphi 0, %s68
    %s70 = sphi 0, %s68
    %s71 = sphi 0, %s70
    %s85 = sphi 0, %s71
    %s89 = sphi 0, %s89
    %s91 = sphi 0, %s89
    %s92 = sphi 0, %s91
    %s106 = sphi 0, %s92
    %s110 = sphi 0, %s110
    %s112 = sphi 0, %s110
    %s113 = sphi 0, %s112
    %s127 = sphi 0, %s113
    %s131 = sphi 0, %s131
    %s133 = sphi 0, %s131
    %s134 = sphi 0, %s133
    %s148 = sphi 0, %s134
    %s152 = sphi 0, %s152
    %s154 = sphi 0, %s152
    %s155 = sphi 0, %s154
    %s169 = sphi 0, %s155
    %s175 = sphi 0, %s177
    %s178 = sphi 0, %s175
    %s179 = sphi 0, %s178
    %s195 = sphi 0, %s179
  $region4: #{qnn_forward.1} parent=0 // loop_header_branch
    %16 = sbr.rel (%p14) target = $region8
  $region5: #{qnn_forward.1} parent=0 // loop_body
    %s18 = ssub.s32 %s13, 1
    %s19 = ssub.s32 %s13, 2
    %s20 = sadd.s32 %s13, 1
    %s21 = ssub.s32 %s13, %s20
    %p22 = scmp.eq.s32.totalorder %s21, 0
    %s24 = sadd.s32 %s23, 1
    %s25 = scalar_select %p22, %s23, %s24
    %p28 = pneg %p22
    %p29 = scmp.eq.s32.totalorder %s13, 3
    %p30 = por %p28, %p29
    %p31 = scmp.ne.s32.totalorder %s23, %s26
    %p32 = scmp.eq.s32.totalorder %s13, 0
    %p33 = por %p31, %p32
    %p34 = scmp.ne.s32.totalorder %s23, %s26
    %p35 = scmp.eq.s32.totalorder %s18, 3
    %p36 = por %p34, %p35
    %p37 = scmp.ne.s32.totalorder %s26, %s27
    %p38 = scmp.eq.s32.totalorder %s18, 0
    %p39 = por %p37, %p38
    %p40 = scmp.ne.s32.totalorder %s26, %s27
    %p41 = scmp.eq.s32.totalorder %s19, 3
    %p42 = por %p40, %p41
    %p44 = scmp.ne.s32.totalorder %s27, %s43
    %p45 = scmp.eq.s32.totalorder %s19, 0
    %p46 = por %p44, %p45
    %s48 = sadd.s32 %s47, 1
    %p51 = scmp.eq.s32.totalorder %s13, 3
    %p52 = scmp.ne.s32.totalorder %s47, %s49
    %p53 = scmp.eq.s32.totalorder %s13, 0
    %p54 = por %p52, %p53
    %p55 = scmp.ne.s32.totalorder %s47, %s49
    %p56 = scmp.eq.s32.totalorder %s18, 3
    %p57 = por %p55, %p56
    %p58 = scmp.ne.s32.totalorder %s49, %s50
    %p59 = scmp.eq.s32.totalorder %s18, 0
    %p60 = por %p58, %p59
    %p61 = scmp.ne.s32.totalorder %s49, %s50
    %p62 = scmp.eq.s32.totalorder %s19, 3
    %p63 = por %p61, %p62
    %p65 = scmp.ne.s32.totalorder %s50, %s64
    %p66 = scmp.eq.s32.totalorder %s19, 0
    %p67 = por %p65, %p66
    %s69 = sadd.s32 %s68, 1
    %p72 = scmp.eq.s32.totalorder %s13, 3
    %p73 = scmp.ne.s32.totalorder %s68, %s70
    %p74 = scmp.eq.s32.totalorder %s13, 0
    %p75 = por %p73, %p74
    %p76 = scmp.ne.s32.totalorder %s68, %s70
    %p77 = scmp.eq.s32.totalorder %s18, 3
    %p78 = por %p76, %p77
    %p79 = scmp.ne.s32.totalorder %s70, %s71
    %p80 = scmp.eq.s32.totalorder %s18, 0
    %p81 = por %p79, %p80
    %p82 = scmp.ne.s32.totalorder %s70, %s71
    %p83 = scmp.eq.s32.totalorder %s19, 3
    %p84 = por %p82, %p83
    %p86 = scmp.ne.s32.totalorder %s71, %s85
    %p87 = scmp.eq.s32.totalorder %s19, 0
    %p88 = por %p86, %p87
    %s90 = sadd.s32 %s89, 1
    %p93 = scmp.eq.s32.totalorder %s13, 3
    %p94 = scmp.ne.s32.totalorder %s89, %s91
    %p95 = scmp.eq.s32.totalorder %s13, 0
    %p96 = por %p94, %p95
    %p97 = scmp.ne.s32.totalorder %s89, %s91
    %p98 = scmp.eq.s32.totalorder %s18, 3
    %p99 = por %p97, %p98
    %p100 = scmp.ne.s32.totalorder %s91, %s92
    %p101 = scmp.eq.s32.totalorder %s18, 0
    %p102 = por %p100, %p101
    %p103 = scmp.ne.s32.totalorder %s91, %s92
    %p104 = scmp.eq.s32.totalorder %s19, 3
    %p105 = por %p103, %p104
    %p107 = scmp.ne.s32.totalorder %s92, %s106
    %p108 = scmp.eq.s32.totalorder %s19, 0
    %p109 = por %p107, %p108
    %s111 = sadd.s32 %s110, 1
    %p114 = scmp.eq.s32.totalorder %s13, 3
    %p115 = scmp.ne.s32.totalorder %s110, %s112
    %p116 = scmp.eq.s32.totalorder %s13, 0
    %p117 = por %p115, %p116
    %p118 = scmp.ne.s32.totalorder %s110, %s112
    %p119 = scmp.eq.s32.totalorder %s18, 3
    %p120 = por %p118, %p119
    %p121 = scmp.ne.s32.totalorder %s112, %s113
    %p122 = scmp.eq.s32.totalorder %s18, 0
    %p123 = por %p121, %p122
    %p124 = scmp.ne.s32.totalorder %s112, %s113
    %p125 = scmp.eq.s32.totalorder %s19, 3
    %p126 = por %p124, %p125
    %p128 = scmp.ne.s32.totalorder %s113, %s127
    %p129 = scmp.eq.s32.totalorder %s19, 0
    %p130 = por %p128, %p129
    %s132 = sadd.s32 %s131, 1
    %p135 = scmp.eq.s32.totalorder %s13, 3
    %p136 = scmp.ne.s32.totalorder %s131, %s133
    %p137 = scmp.eq.s32.totalorder %s13, 0
    %p138 = por %p136, %p137
    %p139 = scmp.ne.s32.totalorder %s131, %s133
    %p140 = scmp.eq.s32.totalorder %s18, 3
    %p141 = por %p139, %p140
    %p142 = scmp.ne.s32.totalorder %s133, %s134
    %p143 = scmp.eq.s32.totalorder %s18, 0
    %p144 = por %p142, %p143
    %p145 = scmp.ne.s32.totalorder %s133, %s134
    %p146 = scmp.eq.s32.totalorder %s19, 3
    %p147 = por %p145, %p146
    %p149 = scmp.ne.s32.totalorder %s134, %s148
    %p150 = scmp.eq.s32.totalorder %s19, 0
    %p151 = por %p149, %p150
    %s153 = sadd.s32 %s152, 1
    %p156 = scmp.eq.s32.totalorder %s13, 3
    %p157 = scmp.ne.s32.totalorder %s152, %s154
    %p158 = scmp.eq.s32.totalorder %s13, 0
    %p159 = por %p157, %p158
    %p160 = scmp.ne.s32.totalorder %s152, %s154
    %p161 = scmp.eq.s32.totalorder %s18, 3
    %p162 = por %p160, %p161
    %p163 = scmp.ne.s32.totalorder %s154, %s155
    %p164 = scmp.eq.s32.totalorder %s18, 0
    %p165 = por %p163, %p164
    %p166 = scmp.ne.s32.totalorder %s154, %s155
    %p167 = scmp.eq.s32.totalorder %s19, 3
    %p168 = por %p166, %p167
    %p170 = scmp.ne.s32.totalorder %s155, %s169
    %p171 = scmp.eq.s32.totalorder %s19, 0
    %p172 = por %p170, %p171
    %s173 = ssub.s32 %s13, %s20
    %p174 = scmp.eq.s32.totalorder %s173, 0
    %s176 = sadd.s32 %s175, 1
    %s177 = scalar_select %p174, %s175, %s176
    %p180 = pneg %p174
    %p181 = scmp.eq.s32.totalorder %s13, 3
    %p182 = por %p180, %p181
    %p183 = scmp.ne.s32.totalorder %s175, %s178
    %p184 = scmp.eq.s32.totalorder %s13, 0
    %p185 = por %p183, %p184
    %p186 = scmp.ne.s32.totalorder %s175, %s178
    %p187 = scmp.eq.s32.totalorder %s18, 3
    %p188 = por %p186, %p187
    %p189 = scmp.ne.s32.totalorder %s178, %s179
    %p190 = scmp.eq.s32.totalorder %s18, 0
    %p191 = por %p189, %p190
    %p192 = scmp.ne.s32.totalorder %s178, %s179
    %p193 = scmp.eq.s32.totalorder %s19, 3
    %p194 = por %p192, %p193
    %p196 = scmp.ne.s32.totalorder %s179, %s195
    %p197 = scmp.eq.s32.totalorder %s19, 0
    %p198 = por %p196, %p197
    %p199 = scmp.le.s32.totalorder 1, %s13
    %p200 = scmp.lt.s32.totalorder %s13, 5
    %p201 = pnand %p199, %p200
    %p202 = pneg %p201
    // Predicated region
    $region9: #{qnn_forward.1} parent=5 // pred_check
      _
    $region10: #{qnn_forward.1} parent=5 // pred_check_branch
      %204 = sbr.rel (%p201) target = $region12
    $region11: #{qnn_forward.1} parent=5 // pred_region
      %s205 = ssub.s32 %s13, 1
      // Predicated region
      $region13: #{qnn_forward.1} parent=11 // pred_check
        %p206 = pneg %p60
      $region14: #{qnn_forward.1} parent=11 // pred_check_branch
        %208 = sbr.rel (%p206) target = $region16
      $region15: #{qnn_forward.1} parent=11 // pred_region
        _
      $region16: #{qnn_forward.1} parent=11 // pred_fallthru
        _
      // Predicated region
      $region17: #{qnn_forward.1} parent=11 // pred_check
        %p209 = pneg %p81
      $region18: #{qnn_forward.1} parent=11 // pred_check_branch
        %211 = sbr.rel (%p209) target = $region20
      $region19: #{qnn_forward.1} parent=11 // pred_region
        _
      $region20: #{qnn_forward.1} parent=11 // pred_fallthru
        _
      // Predicated region
      $region21: #{qnn_forward.1} parent=11 // pred_check
        %p212 = pneg %p102
      $region22: #{qnn_forward.1} parent=11 // pred_check_branch
        %214 = sbr.rel (%p212) target = $region24
      $region23: #{qnn_forward.1} parent=11 // pred_region
        _
      $region24: #{qnn_forward.1} parent=11 // pred_fallthru
        _
      // Predicated region
      $region25: #{qnn_forward.1} parent=11 // pred_check
        %p215 = pneg %p123
      $region26: #{qnn_forward.1} parent=11 // pred_check_branch
        %217 = sbr.rel (%p215) target = $region28
      $region27: #{qnn_forward.1} parent=11 // pred_region
        _
      $region28: #{qnn_forward.1} parent=11 // pred_fallthru
        _
      // Predicated region
      $region29: #{qnn_forward.1} parent=11 // pred_check
        %p218 = pneg %p144
      $region30: #{qnn_forward.1} parent=11 // pred_check_branch
        %220 = sbr.rel (%p218) target = $region32
      $region31: #{qnn_forward.1} parent=11 // pred_region
        _
      $region32: #{qnn_forward.1} parent=11 // pred_fallthru
        _
      // Predicated region
      $region33: #{qnn_forward.1} parent=11 // pred_check
        %p221 = pneg %p165
      $region34: #{qnn_forward.1} parent=11 // pred_check_branch
        %223 = sbr.rel (%p221) target = $region36
      $region35: #{qnn_forward.1} parent=11 // pred_region
        _
      $region36: #{qnn_forward.1} parent=11 // pred_fallthru
        _
    $region12: #{qnn_forward.1} parent=5 // pred_fallthru
      _
    %p224 = scmp.lt.s32.totalorder %s13, 4
    // Predicated region
    $region37: #{qnn_forward.1} parent=5 // pred_check
      %p225 = pneg %p224
    $region38: #{qnn_forward.1} parent=5 // pred_check_branch
      %227 = sbr.rel (%p225) target = $region40
    $region39: #{qnn_forward.1} parent=5 // pred_region
      // Predicated region
      $region41: #{qnn_forward.1} parent=39 // pred_check
        %p228 = pneg %p33
      $region42: #{qnn_forward.1} parent=39 // pred_check_branch
        %230 = sbr.rel (%p228) target = $region44
      $region43: #{qnn_forward.1} parent=39 // pred_region
        %s231 = smul.u32 16, %s13
        %p232 = scmp.lt.s32.totalorder %s231, 63
        %s233 = scalar_select %p232, %s231, 63
        %s234 = smul.addr %s233, 8
        %s235 = scalar_lea.vmem %s0, %s234
        %s236 = smul.u32 16, %s13
      $region44: #{qnn_forward.1} parent=39 // pred_fallthru
        _
    $region40: #{qnn_forward.1} parent=5 // pred_fallthru
      _
    %p237 = scmp.le.s32.totalorder 1, %s13
    %p238 = scmp.lt.s32.totalorder %s13, 5
    %p239 = pnand %p237, %p238
    %p240 = pneg %p239
    // Predicated region
    $region45: #{qnn_forward.1} parent=5 // pred_check
      _
    $region46: #{qnn_forward.1} parent=5 // pred_check_branch
      %242 = sbr.rel (%p239) target = $region48
    $region47: #{qnn_forward.1} parent=5 // pred_region
      %s243 = ssub.s32 %s13, 1
      %s244 = smul.u32 16, %s18
      %p245 = scmp.lt.s32.totalorder %s244, 63
      %s246 = scalar_select %p245, %s244, 63
      %s247 = smul.addr %s246, 8
      %s248 = scalar_lea.vmem %s0, %s247
      %p249 = pneg %p39
      %p250 = pneg %p36
      %p251 = pneg %p60
      %p252 = pneg %p57
      %p253 = pneg %p81
      %p254 = pneg %p78
      %p255 = pneg %p102
      %p256 = pneg %p99
      %p257 = pneg %p123
      %p258 = pneg %p120
      %p259 = pneg %p144
      %p260 = pneg %p141
      %p261 = pneg %p165
      %p262 = pneg %p162
      %p263 = pneg %p191
      %p264 = pneg %p188
      %s265 = smul.u32 16, %s18
      %p266 = scmp.lt.s32.totalorder %s265, 63
      %s267 = scalar_select %p266, %s265, 63
      %s268 = smul.addr %s267, 8
      %s269 = scalar_lea.vmem %s7, %s268
      %s270 = smul.u32 16, %s18
      %p271 = scmp.lt.s32.totalorder %s270, 63
      %s272 = scalar_select %p271, %s270, 63
      %s273 = smul.addr %s272, 8
      %s274 = scalar_lea.vmem %s0, %s273
      %s275 = smul.u32 16, %s18
      %s276 = smul.u32 16, %s18
      %p277 = scmp.lt.s32.totalorder %s276, 63
      %s278 = scalar_select %p277, %s276, 63
      %s279 = smul.addr %s278, 8
      %s280 = scalar_lea.vmem %s7, %s279
      %s281 = smul.u32 16, %s18
      %v282 = vld [vmem:[%s274] sm:$0xff]
      %v283 = vld [vmem:[%s274 + $0x8] sm:$0xff]
      %v284 = vld [vmem:[%s274 + $0x10] sm:$0xff]
      %v285 = vld [vmem:[%s274 + $0x18] sm:$0xff]
      %v286 = vld [vmem:[%s274 + $0x20] sm:$0xff]
      %v287 = vld [vmem:[%s274 + $0x28] sm:$0xff]
      %v288 = vld [vmem:[%s274 + $0x30] sm:$0xff]
      %v289 = vld [vmem:[%s274 + $0x38] sm:$0xff]
      %v290 = vld [vmem:[%s274 + $0x40] sm:$0xff]
      %v291 = vld [vmem:[%s274 + $0x48] sm:$0xff]
      %v292 = vld [vmem:[%s274 + $0x50] sm:$0xff]
      %v293 = vld [vmem:[%s274 + $0x58] sm:$0xff]
      %v294 = vld [vmem:[%s274 + $0x60] sm:$0xff]
      %v295 = vld [vmem:[%s274 + $0x68] sm:$0xff]
      %v296 = vld [vmem:[%s274 + $0x70] sm:$0xff]
      %v297 = vld [vmem:[%s274 + $0x78] sm:$0xff]
      %v298 = vld [vmem:[%s1] sm:$0xf]
      %v299 = vld [vmem:[%s2] sm:$0x1]
      %v301 = vperm.slane %v299, 0
      %304 = vset.pattern.permute.xlu0 0
      %305 = vperm.xlu0 %304, %v282
      %v306 = vpop.permute.xlu0 %305
      %309 = vset.pattern.permute.xlu0 0
      %310 = vperm.xlu0 %309, %v283
      %v311 = vpop.permute.xlu0 %310
      %314 = vset.pattern.permute.xlu0 0
      %315 = vperm.xlu0 %314, %v284
      %v316 = vpop.permute.xlu0 %315
      %319 = vset.pattern.permute.xlu0 0
      %320 = vperm.xlu0 %319, %v285
      %v321 = vpop.permute.xlu0 %320
      %324 = vset.pattern.permute.xlu0 0
      %325 = vperm.xlu0 %324, %v286
      %v326 = vpop.permute.xlu0 %325
      %329 = vset.pattern.permute.xlu0 0
      %330 = vperm.xlu0 %329, %v287
      %v331 = vpop.permute.xlu0 %330
      %334 = vset.pattern.permute.xlu0 0
      %335 = vperm.xlu0 %334, %v288
      %v336 = vpop.permute.xlu0 %335
      %339 = vset.pattern.permute.xlu0 0
      %340 = vperm.xlu0 %339, %v289
      %v341 = vpop.permute.xlu0 %340
      %344 = vset.pattern.permute.xlu0 0
      %345 = vperm.xlu0 %344, %v290
      %v346 = vpop.permute.xlu0 %345
      %349 = vset.pattern.permute.xlu0 0
      %350 = vperm.xlu0 %349, %v291
      %v351 = vpop.permute.xlu0 %350
      %354 = vset.pattern.permute.xlu0 0
      %355 = vperm.xlu0 %354, %v292
      %v356 = vpop.permute.xlu0 %355
      %359 = vset.pattern.permute.xlu0 0
      %360 = vperm.xlu0 %359, %v293
      %v361 = vpop.permute.xlu0 %360
      %364 = vset.pattern.permute.xlu0 0
      %365 = vperm.xlu0 %364, %v294
      %v366 = vpop.permute.xlu0 %365
      %369 = vset.pattern.permute.xlu0 0
      %370 = vperm.xlu0 %369, %v295
      %v371 = vpop.permute.xlu0 %370
      %374 = vset.pattern.permute.xlu0 0
      %375 = vperm.xlu0 %374, %v296
      %v376 = vpop.permute.xlu0 %375
      %379 = vset.pattern.permute.xlu0 0
      %380 = vperm.xlu0 %379, %v297
      %v381 = vpop.permute.xlu0 %380
      %v383 = vperm.slane %v298, 0
      %v384 = vmul.f32 %v306, %v383
      %v385 = vmul.f32 %v311, %v383
      %v386 = vmul.f32 %v316, %v383
      %v387 = vmul.f32 %v321, %v383
      %v388 = vmul.f32 %v326, %v383
      %v389 = vmul.f32 %v331, %v383
      %v390 = vmul.f32 %v336, %v383
      %v391 = vmul.f32 %v341, %v383
      %v392 = vmul.f32 %v346, %v383
      %v393 = vmul.f32 %v351, %v383
      %v394 = vmul.f32 %v356, %v383
      %v395 = vmul.f32 %v361, %v383
      %v396 = vmul.f32 %v366, %v383
      %v397 = vmul.f32 %v371, %v383
      %v398 = vmul.f32 %v376, %v383
      %v399 = vmul.f32 %v381, %v383
      %v400 = vadd.f32 %v301, %v384
      %v401 = vadd.f32 %v301, %v385
      %v402 = vadd.f32 %v301, %v386
      %v403 = vadd.f32 %v301, %v387
      %v404 = vadd.f32 %v301, %v388
      %v405 = vadd.f32 %v301, %v389
      %v406 = vadd.f32 %v301, %v390
      %v407 = vadd.f32 %v301, %v391
      %v408 = vadd.f32 %v301, %v392
      %v409 = vadd.f32 %v301, %v393
      %v410 = vadd.f32 %v301, %v394
      %v411 = vadd.f32 %v301, %v395
      %v412 = vadd.f32 %v301, %v396
      %v413 = vadd.f32 %v301, %v397
      %v414 = vadd.f32 %v301, %v398
      %v415 = vadd.f32 %v301, %v399
      %416 = vset.pattern.permute.xlu0 1
      %417 = vperm.xlu0 %416, %v282
      %v418 = vpop.permute.xlu0 %417
      %420 = vset.pattern.permute.xlu0 1
      %421 = vperm.xlu0 %420, %v283
      %v422 = vpop.permute.xlu0 %421
      %424 = vset.pattern.permute.xlu0 1
      %425 = vperm.xlu0 %424, %v284
      %v426 = vpop.permute.xlu0 %425
      %428 = vset.pattern.permute.xlu0 1
      %429 = vperm.xlu0 %428, %v285
      %v430 = vpop.permute.xlu0 %429
      %432 = vset.pattern.permute.xlu0 1
      %433 = vperm.xlu0 %432, %v286
      %v434 = vpop.permute.xlu0 %433
      %436 = vset.pattern.permute.xlu0 1
      %437 = vperm.xlu0 %436, %v287
      %v438 = vpop.permute.xlu0 %437
      %440 = vset.pattern.permute.xlu0 1
      %441 = vperm.xlu0 %440, %v288
      %v442 = vpop.permute.xlu0 %441
      %444 = vset.pattern.permute.xlu0 1
      %445 = vperm.xlu0 %444, %v289
      %v446 = vpop.permute.xlu0 %445
      %448 = vset.pattern.permute.xlu0 1
      %449 = vperm.xlu0 %448, %v290
      %v450 = vpop.permute.xlu0 %449
      %452 = vset.pattern.permute.xlu0 1
      %453 = vperm.xlu0 %452, %v291
      %v454 = vpop.permute.xlu0 %453
      %456 = vset.pattern.permute.xlu0 1
      %457 = vperm.xlu0 %456, %v292
      %v458 = vpop.permute.xlu0 %457
      %460 = vset.pattern.permute.xlu0 1
      %461 = vperm.xlu0 %460, %v293
      %v462 = vpop.permute.xlu0 %461
      %464 = vset.pattern.permute.xlu0 1
      %465 = vperm.xlu0 %464, %v294
      %v466 = vpop.permute.xlu0 %465
      %468 = vset.pattern.permute.xlu0 1
      %469 = vperm.xlu0 %468, %v295
      %v470 = vpop.permute.xlu0 %469
      %472 = vset.pattern.permute.xlu0 1
      %473 = vperm.xlu0 %472, %v296
      %v474 = vpop.permute.xlu0 %473
      %476 = vset.pattern.permute.xlu0 1
      %477 = vperm.xlu0 %476, %v297
      %v478 = vpop.permute.xlu0 %477
      %v480 = vperm.slane %v298, 1
      %v481 = vmul.f32 %v418, %v480
      %v482 = vmul.f32 %v422, %v480
      %v483 = vmul.f32 %v426, %v480
      %v484 = vmul.f32 %v430, %v480
      %v485 = vmul.f32 %v434, %v480
      %v486 = vmul.f32 %v438, %v480
      %v487 = vmul.f32 %v442, %v480
      %v488 = vmul.f32 %v446, %v480
      %v489 = vmul.f32 %v450, %v480
      %v490 = vmul.f32 %v454, %v480
      %v491 = vmul.f32 %v458, %v480
      %v492 = vmul.f32 %v462, %v480
      %v493 = vmul.f32 %v466, %v480
      %v494 = vmul.f32 %v470, %v480
      %v495 = vmul.f32 %v474, %v480
      %v496 = vmul.f32 %v478, %v480
      %v497 = vadd.f32 %v400, %v481
      %v498 = vadd.f32 %v401, %v482
      %v499 = vadd.f32 %v402, %v483
      %v500 = vadd.f32 %v403, %v484
      %v501 = vadd.f32 %v404, %v485
      %v502 = vadd.f32 %v405, %v486
      %v503 = vadd.f32 %v406, %v487
      %v504 = vadd.f32 %v407, %v488
      %v505 = vadd.f32 %v408, %v489
      %v506 = vadd.f32 %v409, %v490
      %v507 = vadd.f32 %v410, %v491
      %v508 = vadd.f32 %v411, %v492
      %v509 = vadd.f32 %v412, %v493
      %v510 = vadd.f32 %v413, %v494
      %v511 = vadd.f32 %v414, %v495
      %v512 = vadd.f32 %v415, %v496
      %513 = vset.pattern.permute.xlu0 2
      %514 = vperm.xlu0 %513, %v282
      %v515 = vpop.permute.xlu0 %514
      %517 = vset.pattern.permute.xlu0 2
      %518 = vperm.xlu0 %517, %v283
      %v519 = vpop.permute.xlu0 %518
      %521 = vset.pattern.permute.xlu0 2
      %522 = vperm.xlu0 %521, %v284
      %v523 = vpop.permute.xlu0 %522
      %525 = vset.pattern.permute.xlu0 2
      %526 = vperm.xlu0 %525, %v285
      %v527 = vpop.permute.xlu0 %526
      %529 = vset.pattern.permute.xlu0 2
      %530 = vperm.xlu0 %529, %v286
      %v531 = vpop.permute.xlu0 %530
      %533 = vset.pattern.permute.xlu0 2
      %534 = vperm.xlu0 %533, %v287
      %v535 = vpop.permute.xlu0 %534
      %537 = vset.pattern.permute.xlu0 2
      %538 = vperm.xlu0 %537, %v288
      %v539 = vpop.permute.xlu0 %538
      %541 = vset.pattern.permute.xlu0 2
      %542 = vperm.xlu0 %541, %v289
      %v543 = vpop.permute.xlu0 %542
      %545 = vset.pattern.permute.xlu0 2
      %546 = vperm.xlu0 %545, %v290
      %v547 = vpop.permute.xlu0 %546
      %549 = vset.pattern.permute.xlu0 2
      %550 = vperm.xlu0 %549, %v291
      %v551 = vpop.permute.xlu0 %550
      %553 = vset.pattern.permute.xlu0 2
      %554 = vperm.xlu0 %553, %v292
      %v555 = vpop.permute.xlu0 %554
      %557 = vset.pattern.permute.xlu0 2
      %558 = vperm.xlu0 %557, %v293
      %v559 = vpop.permute.xlu0 %558
      %561 = vset.pattern.permute.xlu0 2
      %562 = vperm.xlu0 %561, %v294
      %v563 = vpop.permute.xlu0 %562
      %565 = vset.pattern.permute.xlu0 2
      %566 = vperm.xlu0 %565, %v295
      %v567 = vpop.permute.xlu0 %566
      %569 = vset.pattern.permute.xlu0 2
      %570 = vperm.xlu0 %569, %v296
      %v571 = vpop.permute.xlu0 %570
      %573 = vset.pattern.permute.xlu0 2
      %574 = vperm.xlu0 %573, %v297
      %v575 = vpop.permute.xlu0 %574
      %v577 = vperm.slane %v298, 2
      %v578 = vmul.f32 %v515, %v577
      %v579 = vmul.f32 %v519, %v577
      %v580 = vmul.f32 %v523, %v577
      %v581 = vmul.f32 %v527, %v577
      %v582 = vmul.f32 %v531, %v577
      %v583 = vmul.f32 %v535, %v577
      %v584 = vmul.f32 %v539, %v577
      %v585 = vmul.f32 %v543, %v577
      %v586 = vmul.f32 %v547, %v577
      %v587 = vmul.f32 %v551, %v577
      %v588 = vmul.f32 %v555, %v577
      %v589 = vmul.f32 %v559, %v577
      %v590 = vmul.f32 %v563, %v577
      %v591 = vmul.f32 %v567, %v577
      %v592 = vmul.f32 %v571, %v577
      %v593 = vmul.f32 %v575, %v577
      %v594 = vadd.f32 %v497, %v578
      %v595 = vadd.f32 %v498, %v579
      %v596 = vadd.f32 %v499, %v580
      %v597 = vadd.f32 %v500, %v581
      %v598 = vadd.f32 %v501, %v582
      %v599 = vadd.f32 %v502, %v583
      %v600 = vadd.f32 %v503, %v584
      %v601 = vadd.f32 %v504, %v585
      %v602 = vadd.f32 %v505, %v586
      %v603 = vadd.f32 %v506, %v587
      %v604 = vadd.f32 %v507, %v588
      %v605 = vadd.f32 %v508, %v589
      %v606 = vadd.f32 %v509, %v590
      %v607 = vadd.f32 %v510, %v591
      %v608 = vadd.f32 %v511, %v592
      %v609 = vadd.f32 %v512, %v593
      %610 = vset.pattern.permute.xlu0 3
      %611 = vperm.xlu0 %610, %v282
      %v612 = vpop.permute.xlu0 %611
      %614 = vset.pattern.permute.xlu0 3
      %615 = vperm.xlu0 %614, %v283
      %v616 = vpop.permute.xlu0 %615
      %618 = vset.pattern.permute.xlu0 3
      %619 = vperm.xlu0 %618, %v284
      %v620 = vpop.permute.xlu0 %619
      %622 = vset.pattern.permute.xlu0 3
      %623 = vperm.xlu0 %622, %v285
      %v624 = vpop.permute.xlu0 %623
      %626 = vset.pattern.permute.xlu0 3
      %627 = vperm.xlu0 %626, %v286
      %v628 = vpop.permute.xlu0 %627
      %630 = vset.pattern.permute.xlu0 3
      %631 = vperm.xlu0 %630, %v287
      %v632 = vpop.permute.xlu0 %631
      %634 = vset.pattern.permute.xlu0 3
      %635 = vperm.xlu0 %634, %v288
      %v636 = vpop.permute.xlu0 %635
      %638 = vset.pattern.permute.xlu0 3
      %639 = vperm.xlu0 %638, %v289
      %v640 = vpop.permute.xlu0 %639
      %642 = vset.pattern.permute.xlu0 3
      %643 = vperm.xlu0 %642, %v290
      %v644 = vpop.permute.xlu0 %643
      %646 = vset.pattern.permute.xlu0 3
      %647 = vperm.xlu0 %646, %v291
      %v648 = vpop.permute.xlu0 %647
      %650 = vset.pattern.permute.xlu0 3
      %651 = vperm.xlu0 %650, %v292
      %v652 = vpop.permute.xlu0 %651
      %654 = vset.pattern.permute.xlu0 3
      %655 = vperm.xlu0 %654, %v293
      %v656 = vpop.permute.xlu0 %655
      %658 = vset.pattern.permute.xlu0 3
      %659 = vperm.xlu0 %658, %v294
      %v660 = vpop.permute.xlu0 %659
      %662 = vset.pattern.permute.xlu0 3
      %663 = vperm.xlu0 %662, %v295
      %v664 = vpop.permute.xlu0 %663
      %666 = vset.pattern.permute.xlu0 3
      %667 = vperm.xlu0 %666, %v296
      %v668 = vpop.permute.xlu0 %667
      %670 = vset.pattern.permute.xlu0 3
      %671 = vperm.xlu0 %670, %v297
      %v672 = vpop.permute.xlu0 %671
      %v674 = vperm.slane %v298, 3
      %v675 = vmul.f32 %v612, %v674
      %v676 = vmul.f32 %v616, %v674
      %v677 = vmul.f32 %v620, %v674
      %v678 = vmul.f32 %v624, %v674
      %v679 = vmul.f32 %v628, %v674
      %v680 = vmul.f32 %v632, %v674
      %v681 = vmul.f32 %v636, %v674
      %v682 = vmul.f32 %v640, %v674
      %v683 = vmul.f32 %v644, %v674
      %v684 = vmul.f32 %v648, %v674
      %v685 = vmul.f32 %v652, %v674
      %v686 = vmul.f32 %v656, %v674
      %v687 = vmul.f32 %v660, %v674
      %v688 = vmul.f32 %v664, %v674
      %v689 = vmul.f32 %v668, %v674
      %v690 = vmul.f32 %v672, %v674
      %v691 = vadd.f32 %v594, %v675
      %v692 = vadd.f32 %v595, %v676
      %v693 = vadd.f32 %v596, %v677
      %v694 = vadd.f32 %v597, %v678
      %v695 = vadd.f32 %v598, %v679
      %v696 = vadd.f32 %v599, %v680
      %v697 = vadd.f32 %v600, %v681
      %v698 = vadd.f32 %v601, %v682
      %v699 = vadd.f32 %v602, %v683
      %v700 = vadd.f32 %v603, %v684
      %v701 = vadd.f32 %v604, %v685
      %v702 = vadd.f32 %v605, %v686
      %v703 = vadd.f32 %v606, %v687
      %v704 = vadd.f32 %v607, %v688
      %v705 = vadd.f32 %v608, %v689
      %v706 = vadd.f32 %v609, %v690
      %v707 = vmax.f32 %v691, 0.0
      %v708 = vmax.f32 %v692, 0.0
      %v709 = vmax.f32 %v693, 0.0
      %v710 = vmax.f32 %v694, 0.0
      %v711 = vmax.f32 %v695, 0.0
      %v712 = vmax.f32 %v696, 0.0
      %v713 = vmax.f32 %v697, 0.0
      %v714 = vmax.f32 %v698, 0.0
      %v715 = vmax.f32 %v699, 0.0
      %v716 = vmax.f32 %v700, 0.0
      %v717 = vmax.f32 %v701, 0.0
      %v718 = vmax.f32 %v702, 0.0
      %v719 = vmax.f32 %v703, 0.0
      %v720 = vmax.f32 %v704, 0.0
      %v721 = vmax.f32 %v705, 0.0
      %v722 = vmax.f32 %v706, 0.0
      %v723 = vld [vmem:[%s3] sm:$0xff]
      %v724 = vld [vmem:[%s3 + $0x8] sm:$0xff]
      %v725 = vld [vmem:[%s3 + $0x10] sm:$0xff]
      %v726 = vld [vmem:[%s3 + $0x18] sm:$0xff]
      %v727 = vld [vmem:[%s3 + $0x20] sm:$0xff]
      %v728 = vld [vmem:[%s3 + $0x28] sm:$0xff]
      %v729 = vld [vmem:[%s3 + $0x30] sm:$0xff]
      %v730 = vld [vmem:[%s3 + $0x38] sm:$0xff]
      %v731 = vld [vmem:[%s3 + $0x40] sm:$0xff]
      %v732 = vld [vmem:[%s3 + $0x48] sm:$0xff]
      %v733 = vld [vmem:[%s3 + $0x50] sm:$0xff]
      %v734 = vld [vmem:[%s3 + $0x58] sm:$0xff]
      %v735 = vld [vmem:[%s3 + $0x60] sm:$0xff]
      %v736 = vld [vmem:[%s3 + $0x68] sm:$0xff]
      %v737 = vld [vmem:[%s3 + $0x70] sm:$0xff]
      %v738 = vld [vmem:[%s3 + $0x78] sm:$0xff]
      %v739 = vld [vmem:[%s4] sm:$0x1]
      %v741 = vperm.slane %v739, 0
      %743 = vmatpush.msra.mxu0 %v738
      %744 = vmatpush.msra.mxu0 %v737
      %745 = vmatpush.msra.mxu0 %v736
      %746 = vmatpush.msra.mxu0 %v735
      %747 = vmatpush.msra.mxu0 %v734
      %748 = vmatpush.msra.mxu0 %v733
      %749 = vmatpush.msra.mxu0 %v732
      %750 = vmatpush.msra.mxu0 %v731
      %751 = vmatpush.msra.mxu0 %v730
      %752 = vmatpush.msra.mxu0 %v729
      %753 = vmatpush.msra.mxu0 %v728
      %754 = vmatpush.msra.mxu0 %v727
      %755 = vmatpush.msra.mxu0 %v726
      %756 = vmatpush.msra.mxu0 %v725
      %757 = vmatpush.msra.mxu0 %v724
      %758 = vmatpush.msra.mxu0 %v723
      %759 = vmatmul.f32.gmra.mxu0 %v707
      %v760 = vpop.f32.mrf.mxu0
      %v761 = vadd.f32 %v741, %v760
      %762 = vmatmul.f32.gmra.mxu0 %v708
      %v763 = vpop.f32.mrf.mxu0
      %v764 = vadd.f32 %v741, %v763
      %765 = vmatmul.f32.gmra.mxu0 %v709
      %v766 = vpop.f32.mrf.mxu0
      %v767 = vadd.f32 %v741, %v766
      %768 = vmatmul.f32.gmra.mxu0 %v710
      %v769 = vpop.f32.mrf.mxu0
      %v770 = vadd.f32 %v741, %v769
      %771 = vmatmul.f32.gmra.mxu0 %v711
      %v772 = vpop.f32.mrf.mxu0
      %v773 = vadd.f32 %v741, %v772
      %774 = vmatmul.f32.gmra.mxu0 %v712
      %v775 = vpop.f32.mrf.mxu0
      %v776 = vadd.f32 %v741, %v775
      %777 = vmatmul.f32.gmra.mxu0 %v713
      %v778 = vpop.f32.mrf.mxu0
      %v779 = vadd.f32 %v741, %v778
      %780 = vmatmul.f32.gmra.mxu0 %v714
      %v781 = vpop.f32.mrf.mxu0
      %v782 = vadd.f32 %v741, %v781
      %783 = vmatmul.f32.gmra.mxu0 %v715
      %v784 = vpop.f32.mrf.mxu0
      %v785 = vadd.f32 %v741, %v784
      %786 = vmatmul.f32.gmra.mxu0 %v716
      %v787 = vpop.f32.mrf.mxu0
      %v788 = vadd.f32 %v741, %v787
      %789 = vmatmul.f32.gmra.mxu0 %v717
      %v790 = vpop.f32.mrf.mxu0
      %v791 = vadd.f32 %v741, %v790
      %792 = vmatmul.f32.gmra.mxu0 %v718
      %v793 = vpop.f32.mrf.mxu0
      %v794 = vadd.f32 %v741, %v793
      %795 = vmatmul.f32.gmra.mxu0 %v719
      %v796 = vpop.f32.mrf.mxu0
      %v797 = vadd.f32 %v741, %v796
      %798 = vmatmul.f32.gmra.mxu0 %v720
      %v799 = vpop.f32.mrf.mxu0
      %v800 = vadd.f32 %v741, %v799
      %801 = vmatmul.f32.gmra.mxu0 %v721
      %v802 = vpop.f32.mrf.mxu0
      %v803 = vadd.f32 %v741, %v802
      %804 = vmatmul.f32.gmra.mxu0 %v722
      %v805 = vpop.f32.mrf.mxu0
      %v806 = vadd.f32 %v741, %v805
      %807 = vdwg.mxu0
      %v808 = vmax.f32 %v761, 0.0
      %v809 = vmax.f32 %v764, 0.0
      %v810 = vmax.f32 %v767, 0.0
      %v811 = vmax.f32 %v770, 0.0
      %v812 = vmax.f32 %v773, 0.0
      %v813 = vmax.f32 %v776, 0.0
      %v814 = vmax.f32 %v779, 0.0
      %v815 = vmax.f32 %v782, 0.0
      %v816 = vmax.f32 %v785, 0.0
      %v817 = vmax.f32 %v788, 0.0
      %v818 = vmax.f32 %v791, 0.0
      %v819 = vmax.f32 %v794, 0.0
      %v820 = vmax.f32 %v797, 0.0
      %v821 = vmax.f32 %v800, 0.0
      %v822 = vmax.f32 %v803, 0.0
      %v823 = vmax.f32 %v806, 0.0
      %v824 = vld [vmem:[%s5] sm:$0xff]
      %v825 = vld [vmem:[%s5 + $0x8] sm:$0xff]
      %v826 = vld [vmem:[%s5 + $0x10] sm:$0xff]
      %v827 = vld [vmem:[%s5 + $0x18] sm:$0xff]
      %v828 = vld [vmem:[%s5 + $0x20] sm:$0xff]
      %v829 = vld [vmem:[%s5 + $0x28] sm:$0xff]
      %v830 = vld [vmem:[%s5 + $0x30] sm:$0xff]
      %v831 = vld [vmem:[%s5 + $0x38] sm:$0xff]
      %v832 = vld [vmem:[%s5 + $0x40] sm:$0xff]
      %v833 = vld [vmem:[%s5 + $0x48] sm:$0xff]
      %v834 = vld [vmem:[%s5 + $0x50] sm:$0xff]
      %v835 = vld [vmem:[%s5 + $0x58] sm:$0xff]
      %v836 = vld [vmem:[%s5 + $0x60] sm:$0xff]
      %v837 = vld [vmem:[%s5 + $0x68] sm:$0xff]
      %v838 = vld [vmem:[%s5 + $0x70] sm:$0xff]
      %v839 = vld [vmem:[%s5 + $0x78] sm:$0xff]
      %v840 = vld [vmem:[%s6] sm:$0x1]
      %v842 = vperm.slane %v840, 0
      %844 = vmatpush.msra.mxu0 %v839
      %845 = vmatpush.msra.mxu0 %v838
      %846 = vmatpush.msra.mxu0 %v837
      %847 = vmatpush.msra.mxu0 %v836
      %848 = vmatpush.msra.mxu0 %v835
      %849 = vmatpush.msra.mxu0 %v834
      %850 = vmatpush.msra.mxu0 %v833
      %851 = vmatpush.msra.mxu0 %v832
      %852 = vmatpush.msra.mxu0 %v831
      %853 = vmatpush.msra.mxu0 %v830
      %854 = vmatpush.msra.mxu0 %v829
      %855 = vmatpush.msra.mxu0 %v828
      %856 = vmatpush.msra.mxu0 %v827
      %857 = vmatpush.msra.mxu0 %v826
      %858 = vmatpush.msra.mxu0 %v825
      %859 = vmatpush.msra.mxu0 %v824
      %860 = vmatmul.f32.gmra.mxu0 %v808
      %v861 = vpop.f32.mrf.mxu0
      %v862 = vadd.f32 %v842, %v861
      %863 = vmatmul.f32.gmra.mxu0 %v809
      %v864 = vpop.f32.mrf.mxu0
      %v865 = vadd.f32 %v842, %v864
      %866 = vmatmul.f32.gmra.mxu0 %v810
      %v867 = vpop.f32.mrf.mxu0
      %v868 = vadd.f32 %v842, %v867
      %869 = vmatmul.f32.gmra.mxu0 %v811
      %v870 = vpop.f32.mrf.mxu0
      %v871 = vadd.f32 %v842, %v870
      %872 = vmatmul.f32.gmra.mxu0 %v812
      %v873 = vpop.f32.mrf.mxu0
      %v874 = vadd.f32 %v842, %v873
      %875 = vmatmul.f32.gmra.mxu0 %v813
      %v876 = vpop.f32.mrf.mxu0
      %v877 = vadd.f32 %v842, %v876
      %878 = vmatmul.f32.gmra.mxu0 %v814
      %v879 = vpop.f32.mrf.mxu0
      %v880 = vadd.f32 %v842, %v879
      %881 = vmatmul.f32.gmra.mxu0 %v815
      %v882 = vpop.f32.mrf.mxu0
      %v883 = vadd.f32 %v842, %v882
      %884 = vmatmul.f32.gmra.mxu0 %v816
      %v885 = vpop.f32.mrf.mxu0
      %v886 = vadd.f32 %v842, %v885
      %887 = vmatmul.f32.gmra.mxu0 %v817
      %v888 = vpop.f32.mrf.mxu0
      %v889 = vadd.f32 %v842, %v888
      %890 = vmatmul.f32.gmra.mxu0 %v818
      %v891 = vpop.f32.mrf.mxu0
      %v892 = vadd.f32 %v842, %v891
      %893 = vmatmul.f32.gmra.mxu0 %v819
      %v894 = vpop.f32.mrf.mxu0
      %v895 = vadd.f32 %v842, %v894
      %896 = vmatmul.f32.gmra.mxu0 %v820
      %v897 = vpop.f32.mrf.mxu0
      %v898 = vadd.f32 %v842, %v897
      %899 = vmatmul.f32.gmra.mxu0 %v821
      %v900 = vpop.f32.mrf.mxu0
      %v901 = vadd.f32 %v842, %v900
      %902 = vmatmul.f32.gmra.mxu0 %v822
      %v903 = vpop.f32.mrf.mxu0
      %v904 = vadd.f32 %v842, %v903
      %905 = vmatmul.f32.gmra.mxu0 %v823
      %v906 = vpop.f32.mrf.mxu0
      %v907 = vadd.f32 %v842, %v906
      %908 = vdwg.mxu0
      %v909 = vmax.f32 %v862, 0.0
      %v910 = vmax.f32 %v865, 0.0
      %v911 = vmax.f32 %v868, 0.0
      %v912 = vmax.f32 %v871, 0.0
      %v913 = vmax.f32 %v874, 0.0
      %v914 = vmax.f32 %v877, 0.0
      %v915 = vmax.f32 %v880, 0.0
      %v916 = vmax.f32 %v883, 0.0
      %v917 = vmax.f32 %v886, 0.0
      %v918 = vmax.f32 %v889, 0.0
      %v919 = vmax.f32 %v892, 0.0
      %v920 = vmax.f32 %v895, 0.0
      %v921 = vmax.f32 %v898, 0.0
      %v922 = vmax.f32 %v901, 0.0
      %v923 = vmax.f32 %v904, 0.0
      %v924 = vmax.f32 %v907, 0.0
      %925 = vst [vmem:[%s280] sm:$0xff] %v909
      %926 = vst [vmem:[%s280 + $0x8] sm:$0xff] %v910
      %927 = vst [vmem:[%s280 + $0x10] sm:$0xff] %v911
      %928 = vst [vmem:[%s280 + $0x18] sm:$0xff] %v912
      %929 = vst [vmem:[%s280 + $0x20] sm:$0xff] %v913
      %930 = vst [vmem:[%s280 + $0x28] sm:$0xff] %v914
      %931 = vst [vmem:[%s280 + $0x30] sm:$0xff] %v915
      %932 = vst [vmem:[%s280 + $0x38] sm:$0xff] %v916
      %933 = vst [vmem:[%s280 + $0x40] sm:$0xff] %v917
      %934 = vst [vmem:[%s280 + $0x48] sm:$0xff] %v918
      %935 = vst [vmem:[%s280 + $0x50] sm:$0xff] %v919
      %936 = vst [vmem:[%s280 + $0x58] sm:$0xff] %v920
      %937 = vst [vmem:[%s280 + $0x60] sm:$0xff] %v921
      %938 = vst [vmem:[%s280 + $0x68] sm:$0xff] %v922
      %939 = vst [vmem:[%s280 + $0x70] sm:$0xff] %v923
      %940 = vst [vmem:[%s280 + $0x78] sm:$0xff] %v924
      %s941 = smul.u32 16, %s18
      %p942 = scmp.lt.s32.totalorder %s941, 63
      %s943 = scalar_select %p942, %s941, 63
      %s944 = smul.addr %s943, 8
      %s945 = scalar_lea.vmem %s7, %s944
      // Predicated region
      $region49: #{qnn_forward.1} parent=47 // pred_check
        %p946 = pneg %p188
      $region50: #{qnn_forward.1} parent=47 // pred_check_branch
        %948 = sbr.rel (%p946) target = $region52
      $region51: #{qnn_forward.1} parent=47 // pred_region
        %s949 = smul.u32 16, %s18
      $region52: #{qnn_forward.1} parent=47 // pred_fallthru
        _
    $region48: #{qnn_forward.1} parent=5 // pred_fallthru
      _
    %p950 = scmp.le.s32.totalorder 2, %s13
    // Predicated region
    $region53: #{qnn_forward.1} parent=5 // pred_check
      %p951 = pneg %p950
    $region54: #{qnn_forward.1} parent=5 // pred_check_branch
      %953 = sbr.rel (%p951) target = $region56
    $region55: #{qnn_forward.1} parent=5 // pred_region
      %s954 = ssub.s32 %s13, 2
      // Predicated region
      $region57: #{qnn_forward.1} parent=55 // pred_check
        %p955 = pneg %p194
      $region58: #{qnn_forward.1} parent=55 // pred_check_branch
        %957 = sbr.rel (%p955) target = $region60
      $region59: #{qnn_forward.1} parent=55 // pred_region
        %s958 = smul.u32 16, %s19
        %p959 = scmp.lt.s32.totalorder %s958, 63
        %s960 = scalar_select %p959, %s958, 63
        %s961 = smul.addr %s960, 8
        %s962 = scalar_lea.vmem %s7, %s961
      $region60: #{qnn_forward.1} parent=55 // pred_fallthru
        _
    $region56: #{qnn_forward.1} parent=5 // pred_fallthru
      _
  $region6: #{qnn_forward.1} parent=0 // loop_footer
    %s17 = sadd.s32 1, %s13
  $region7: #{qnn_forward.1} parent=0 // loop_footer_branch
    %12 = sbr.rel target = $region3
  $region8: #{qnn_forward.1} parent=0 // loop_exit
    _

</llo_original>
